<compile_context>
chip_gen: v6e
topology: v6e:2x2x1
jax: 0.10.0
libtpu: 0.0.40
codegen_flags: <defaults>
</compile_context>

<pallas_src>
import jax
import jax.numpy as jnp
from jax.experimental import pallas as pl
from jax.experimental.pallas import tpu as pltpu

EPS = 1e-5  # nn.LayerNorm default eps


def _cnn_layernorm_kernel(x_ref, w_ref, b_ref, o_ref):
    # x_ref/o_ref: (bc_tile, F, t_tile)   w_ref/b_ref: (F, 1)
    x = x_ref[...].astype(jnp.float32)
    inv_f = 1.0 / x.shape[1]                                  # static
    mean = jnp.sum(x, axis=1, keepdims=True) * inv_f          # (bc, 1, t)
    xc = x - mean
    var = jnp.sum(xc * xc, axis=1, keepdims=True) * inv_f     # biased, like torch LN
    inv = jax.lax.rsqrt(var + EPS)                            # EUP slot, ~free
    # (F, 1) broadcasts against (bc, F, t) -> scale/shift along F.
    y = xc * inv * w_ref[...] + b_ref[...]
    o_ref[...] = y.astype(o_ref.dtype)


def _vmem_budget_bytes():
    """Usable VMEM (with headroom), derived per TPU generation."""
    try:
        cap = int(pltpu.get_tpu_info().vmem_capacity_bytes)
    except Exception:
        cap = 64 << 20  # conservative fallback: v7x per-TensorCore VMEM
    return (cap * 3) // 4  # leave headroom for compiler scratch


def _choose_tiles(BC, F, T, itemsize, block_budget):
    """Pick (bc_tile, t_tile).  Prefer full-T contiguous blocks; otherwise tile
    T in multiples of 128 and let Pallas mask the partial tail block."""
    row_bytes = F * T * itemsize
    if row_bytes <= block_budget or T <= 128:
        bc_tile = max(1, min(BC, block_budget // max(row_bytes, 1)))
        if BC >= 2:
            # Keep >= 2 blocks along the leading (parallel) axis so both
            # TensorCores on v7x get work; measured-neutral on v5e/v6e.
            bc_tile = min(bc_tile, pl.cdiv(BC, 2))
        return bc_tile, T
    # One (1, F, T) row exceeds the budget: tile along T (lane axis).
    max_lanes = max(128, ((block_budget // (F * itemsize)) // 128) * 128)
    return 1, min(max_lanes, T)


def cnn_layer_norm(x, weight, bias, *, block_budget_bytes=None):
    """x: (B, C, n_feats, T). weight/bias: (n_feats,). Returns same shape/dtype."""
    B, C, F, T = x.shape
    BC = B * C
    xr = x.reshape(BC, F, T)  # free view (merging leading dims)

    vmem_budget = _vmem_budget_bytes()
    if block_budget_bytes is None:
        # ~1/10 of usable VMEM per block: 2 in + 2 out double buffers in the
        # input dtype plus ~3 full-tile f32 temporaries fit comfortably.
        block_budget_bytes = max(128 * 1024, vmem_budget // 10)

    bc_tile, t_tile = _choose_tiles(BC, F, T, x.dtype.itemsize, block_budget_bytes)
    grid = (pl.cdiv(BC, bc_tile), pl.cdiv(T, t_tile))

    w2 = weight.reshape(F, 1).astype(jnp.float32)
    b2 = bias.reshape(F, 1).astype(jnp.float32)

    out = pl.pallas_call(
        _cnn_layernorm_kernel,
        out_shape=jax.ShapeDtypeStruct((BC, F, T), x.dtype),
        grid=grid,
        in_specs=[
            pl.BlockSpec((bc_tile, F, t_tile), lambda i, j: (i, 0, j)),
            pl.BlockSpec((F, 1), lambda i, j: (0, 0)),
            pl.BlockSpec((F, 1), lambda i, j: (0, 0)),
        ],
        out_specs=pl.BlockSpec((bc_tile, F, t_tile), lambda i, j: (i, 0, j)),
        compiler_params=pltpu.CompilerParams(
            dimension_semantics=("parallel", "parallel"),
            vmem_limit_bytes=int(vmem_budget),
        ),
    )(xr, w2, b2)

    return out.reshape(B, C, F, T)


def _reference(x, weight, bias):
    # Pure-JAX reference mirroring transpose -> LayerNorm(n_feats) -> transpose,
    # i.e. normalization over axis 2 of the NCHW tensor.
    mean = jnp.mean(x, axis=2, keepdims=True)
    var = jnp.mean((x - mean) ** 2, axis=2, keepdims=True)
    w = weight[None, None, :, None]
    b = bias[None, None, :, None]
    return (x - mean) / jnp.sqrt(var + EPS) * w + b


if __name__ == "__main__":
    key = jax.random.PRNGKey(0)
    kx, kw, kb, kx2 = jax.random.split(key, 4)

    # --- Case 1: small shape matching the module (full-T, bc-batched blocks) ---
    B, C, n_feats, T = 2, 4, 16, 16
    x = jax.random.normal(kx, (B, C, n_feats, T), dtype=jnp.float32)
    weight = 1.0 + 0.1 * jax.random.normal(kw, (n_feats,), dtype=jnp.float32)
    bias = 0.1 * jax.random.normal(kb, (n_feats,), dtype=jnp.float32)

    out = jax.block_until_ready(cnn_layer_norm(x, weight, bias))
    ref = _reference(x, weight, bias)
    assert out.shape == x.shape
    assert jnp.allclose(out, ref, atol=1e-5, rtol=1e-5), "mismatch vs reference (case 1)"

    # --- Case 2: ragged T with a tiny block budget to exercise the T-tiled,
    # masked-tail path (no padding, no output slicing). ---
    B2, C2, T2 = 1, 2, 300
    x2 = jax.random.normal(kx2, (B2, C2, n_feats, T2), dtype=jnp.float32)
    out2 = jax.block_until_ready(
        cnn_layer_norm(x2, weight, bias, block_budget_bytes=16 * 1024)
    )
    ref2 = _reference(x2, weight, bias)
    assert out2.shape == x2.shape
    assert jnp.allclose(out2, ref2, atol=1e-5, rtol=1e-5), "mismatch vs reference (case 2)"

    print("KERNEL_OK")
</pallas_src>

<mosaic_0001>
module attributes {stable_mosaic.version = 11 : i64} {
  func.func @_cnn_layernorm_kernel(%arg0: i32, %arg1: i32, %arg2: memref<4x16x16xf32, #tpu.memory_space<vmem>>, %arg3: memref<16x1xf32, #tpu.memory_space<vmem>>, %arg4: memref<16x1xf32, #tpu.memory_space<vmem>>, %arg5: memref<4x16x16xf32, #tpu.memory_space<vmem>>) attributes {dimension_semantics = [#tpu.dimension_semantics<parallel>, #tpu.dimension_semantics<parallel>], iteration_bounds = array<i64: 2, 1>, scalar_prefetch = 0 : i64, scratch_operands = 0 : i64, tpu.core_type = #tpu.core_type<tc>, window_params = [{transform_indices = @transform_0, window_bounds = array<i64: 4, 16, 16>}, {pipeline_mode = #tpu.pipeline_mode<synchronous>, transform_indices = @transform_1, window_bounds = array<i64: 16, 1>}, {pipeline_mode = #tpu.pipeline_mode<synchronous>, transform_indices = @transform_2, window_bounds = array<i64: 16, 1>}, {transform_indices = @transform_3, window_bounds = array<i64: 4, 16, 16>}]} {
    %c0 = arith.constant 0 : index
    %c0_0 = arith.constant 0 : index
    %c0_1 = arith.constant 0 : index
    %0 = vector.load %arg2[%c0, %c0_0, %c0_1] : memref<4x16x16xf32, #tpu.memory_space<vmem>>, vector<4x16x16xf32>
    %cst = arith.constant dense<0.000000e+00> : vector<4x16xf32>
    %1 = vector.multi_reduction <add>, %0, %cst [1] : vector<4x16x16xf32> to vector<4x16xf32>
    %2 = vector.shape_cast %1 : vector<4x16xf32> to vector<4x1x16xf32>
    %cst_2 = arith.constant 6.250000e-02 : f32
    %3 = vector.broadcast %cst_2 : f32 to vector<4x1x16xf32>
    %4 = arith.mulf %2, %3 : vector<4x1x16xf32>
    %5 = vector.broadcast %4 : vector<4x1x16xf32> to vector<4x16x16xf32>
    %6 = arith.subf %0, %5 : vector<4x16x16xf32>
    %7 = arith.mulf %6, %6 : vector<4x16x16xf32>
    %cst_3 = arith.constant dense<0.000000e+00> : vector<4x16xf32>
    %8 = vector.multi_reduction <add>, %7, %cst_3 [1] : vector<4x16x16xf32> to vector<4x16xf32>
    %9 = vector.shape_cast %8 : vector<4x16xf32> to vector<4x1x16xf32>
    %cst_4 = arith.constant 6.250000e-02 : f32
    %10 = vector.broadcast %cst_4 : f32 to vector<4x1x16xf32>
    %11 = arith.mulf %9, %10 : vector<4x1x16xf32>
    %cst_5 = arith.constant 9.99999974E-6 : f32
    %12 = vector.broadcast %cst_5 : f32 to vector<4x1x16xf32>
    %13 = arith.addf %11, %12 : vector<4x1x16xf32>
    %14 = math.rsqrt %13 : vector<4x1x16xf32>
    %15 = vector.broadcast %14 : vector<4x1x16xf32> to vector<4x16x16xf32>
    %16 = arith.mulf %6, %15 : vector<4x16x16xf32>
    %c0_6 = arith.constant 0 : index
    %c0_7 = arith.constant 0 : index
    %17 = vector.load %arg3[%c0_6, %c0_7] : memref<16x1xf32, #tpu.memory_space<vmem>>, vector<16x1xf32>
    %18 = vector.shape_cast %17 : vector<16x1xf32> to vector<1x16x1xf32>
    %19 = vector.broadcast %18 : vector<1x16x1xf32> to vector<4x16x16xf32>
    %20 = arith.mulf %16, %19 : vector<4x16x16xf32>
    %c0_8 = arith.constant 0 : index
    %c0_9 = arith.constant 0 : index
    %21 = vector.load %arg4[%c0_8, %c0_9] : memref<16x1xf32, #tpu.memory_space<vmem>>, vector<16x1xf32>
    %22 = vector.shape_cast %21 : vector<16x1xf32> to vector<1x16x1xf32>
    %23 = vector.broadcast %22 : vector<1x16x1xf32> to vector<4x16x16xf32>
    %24 = arith.addf %20, %23 : vector<4x16x16xf32>
    %c0_10 = arith.constant 0 : index
    %c0_11 = arith.constant 0 : index
    %c0_12 = arith.constant 0 : index
    %25 = vector.load %arg5[%c0_10, %c0_11, %c0_12] : memref<4x16x16xf32, #tpu.memory_space<vmem>>, vector<4x16x16xf32>
    tpu.vector_store %arg5[%c0_10, %c0_11, %c0_12], %24 {strides = array<i32>} : memref<4x16x16xf32, #tpu.memory_space<vmem>>, vector<4x16x16xf32>,
    return
  }
  func.func @transform_0(%arg0: i32, %arg1: i32) -> (i32, i32, i32) {
    %c0_i32 = arith.constant 0 : i32
    %c0_i32_0 = arith.constant 0 : i32
    return %arg0, %c0_i32, %arg1 : i32, i32, i32
  }
  func.func @transform_1(%arg0: i32, %arg1: i32) -> (i32, i32) {
    %c0_i32 = arith.constant 0 : i32
    %c0_i32_0 = arith.constant 0 : i32
    %c0_i32_1 = arith.constant 0 : i32
    return %c0_i32, %c0_i32_0 : i32, i32
  }
  func.func @transform_2(%arg0: i32, %arg1: i32) -> (i32, i32) {
    %c0_i32 = arith.constant 0 : i32
    %c0_i32_0 = arith.constant 0 : i32
    %c0_i32_1 = arith.constant 0 : i32
    return %c0_i32, %c0_i32_0 : i32, i32
  }
  func.func @transform_3(%arg0: i32, %arg1: i32) -> (i32, i32, i32) {
    %c0_i32 = arith.constant 0 : i32
    %c0_i32_0 = arith.constant 0 : i32
    return %arg0, %c0_i32, %arg1 : i32, i32, i32
  }
}

</mosaic_0001>

<llo_original>
// kernel: tpu_custom_call.1
$region0: #{tpu_custom_call.1}
  #allocation0 [shape = 'u32[]', space=smem, size = 0x4, offset = 0x4, fixed_abs, tag = 'smem constant byte address 0x4 - core index']
  #allocation1 [shape = 'u32[144,128]{1,0:T(1,128)}', space=vmem, size = 0x12000, scoped, tag = 'internal scratch']
  %s0 = inlined_call_operand.hbm [shape: f32[8,16,16], index: 0, kind: input, shape index: {}]
  %s1 = inlined_call_operand.vmem [shape: f32[16,1], index: 1, kind: input, shape index: {}]
  %s2 = inlined_call_operand.vmem [shape: f32[16,1], index: 2, kind: input, shape index: {}]
  %s3 = inlined_call_operand.hbm [shape: f32[8,16,16], index: 3, kind: output, shape index: {}]
  %s4 = sld [smem:[#allocation0]]
  $region49: #{tpu_custom_call.1} parent=0
    _
  %s6 = ssub.s32 1, %s4
  %s7 = scalar_select 0, %s6, %s4
  $region1: #{tpu_custom_call.1} parent=0
    #allocation2 [shape = 'u8[65536]{0}', space=vmem, size = 0x10000, scoped, tag = 'input window, operand 0']
    #allocation3 [shape = 's32[2]{0}', space=sflag, size = 0x8, scoped, tag = 'scoped memory for tpu_custom_call.1']
    #allocation4 [shape = 's32[2]{0}', space=sflag, size = 0x8, scoped, tag = 'scoped memory for tpu_custom_call.1']
    #allocation5 [shape = 'u8[65536]{0}', space=vmem, size = 0x10000, scoped, tag = 'output window, operand 0']
    %8 = vsyncpa [#allocation3], 0
    %s9 = scalar_lea.sflag [#allocation3], 1
    %10 = vsyncpa %s9, 0
    %11 = vsyncpa [#allocation4], 0
    %s12 = scalar_lea.sflag [#allocation4], 1
    %13 = vsyncpa %s12, 0
    loop: start=0, step=1, limit=4
    $region2: #{tpu_custom_call.1} parent=1 // loop_pre_header
      _
    $region3: #{tpu_custom_call.1} parent=1 // loop_header
      %s15 = sphi 0, %s19
      %p16 = scmp.ge.s32.totalorder %s15, 4
      %s22 = sphi 0, %s34
      %s23 = sphi 0, %s30
      %s24 = sphi 0, %s22
      %s25 = sphi 0, %s23
      %s26 = sphi 0, %s24
      %s27 = sphi 0, %s25
      %s39 = sphi 0, %s41
      %s42 = sphi 0, %s39
      %s43 = sphi 0, %s42
      %s59 = sphi 0, %s43
      %s63 = sphi 0, %s63
      %s65 = sphi 0, %s63
      %s66 = sphi 0, %s65
      %s80 = sphi 0, %s66
      %s84 = sphi 0, %s84
      %s86 = sphi 0, %s84
      %s87 = sphi 0, %s86
      %s101 = sphi 0, %s87
      %s109 = sphi 0, %s111
      %s112 = sphi 0, %s109
      %s113 = sphi 0, %s112
      %s129 = sphi 0, %s113
    $region4: #{tpu_custom_call.1} parent=1 // loop_header_branch
      %18 = sbr.rel (%p16) target = $region8
    $region5: #{tpu_custom_call.1} parent=1 // loop_body
      %s20 = ssub.s32 %s15, 1
      %s21 = ssub.s32 %s15, 2
      %s28 = sadd.s32 1, %s23
      %p29 = scmp.ge.s32.totalorder %s28, 1
      %s30 = scalar_select %p29, 0, %s28
      %s31 = sadd.s32 1, %s22
      %s32 = scalar_select %p29, %s31, %s22
      %p33 = scmp.ge.s32.totalorder %s32, 2
      %s34 = scalar_select %p33, 0, %s32
      %s35 = ssub.s32 %s22, %s34
      %s36 = ssub.s32 %s23, %s30
      %s37 = sor.u32 %s35, %s36
      %p38 = scmp.eq.s32.totalorder %s37, 0
      %s40 = sadd.s32 %s39, 1
      %s41 = scalar_select %p38, %s39, %s40
      %p44 = pneg %p38
      %p45 = scmp.eq.s32.totalorder %s15, 1
      %p46 = por %p44, %p45
      %p47 = scmp.ne.s32.totalorder %s39, %s42
      %p48 = scmp.eq.s32.totalorder %s15, 0
      %p49 = por %p47, %p48
      %p50 = scmp.ne.s32.totalorder %s39, %s42
      %p51 = scmp.eq.s32.totalorder %s20, 1
      %p52 = por %p50, %p51
      %p53 = scmp.ne.s32.totalorder %s42, %s43
      %p54 = scmp.eq.s32.totalorder %s20, 0
      %p55 = por %p53, %p54
      %p56 = scmp.ne.s32.totalorder %s42, %s43
      %p57 = scmp.eq.s32.totalorder %s21, 1
      %p58 = por %p56, %p57
      %p60 = scmp.ne.s32.totalorder %s43, %s59
      %p61 = scmp.eq.s32.totalorder %s21, 0
      %p62 = por %p60, %p61
      %s64 = sadd.s32 %s63, 1
      %p67 = scmp.eq.s32.totalorder %s15, 1
      %p68 = scmp.ne.s32.totalorder %s63, %s65
      %p69 = scmp.eq.s32.totalorder %s15, 0
      %p70 = por %p68, %p69
      %p71 = scmp.ne.s32.totalorder %s63, %s65
      %p72 = scmp.eq.s32.totalorder %s20, 1
      %p73 = por %p71, %p72
      %p74 = scmp.ne.s32.totalorder %s65, %s66
      %p75 = scmp.eq.s32.totalorder %s20, 0
      %p76 = por %p74, %p75
      %p77 = scmp.ne.s32.totalorder %s65, %s66
      %p78 = scmp.eq.s32.totalorder %s21, 1
      %p79 = por %p77, %p78
      %p81 = scmp.ne.s32.totalorder %s66, %s80
      %p82 = scmp.eq.s32.totalorder %s21, 0
      %p83 = por %p81, %p82
      %s85 = sadd.s32 %s84, 1
      %p88 = scmp.eq.s32.totalorder %s15, 1
      %p89 = scmp.ne.s32.totalorder %s84, %s86
      %p90 = scmp.eq.s32.totalorder %s15, 0
      %p91 = por %p89, %p90
      %p92 = scmp.ne.s32.totalorder %s84, %s86
      %p93 = scmp.eq.s32.totalorder %s20, 1
      %p94 = por %p92, %p93
      %p95 = scmp.ne.s32.totalorder %s86, %s87
      %p96 = scmp.eq.s32.totalorder %s20, 0
      %p97 = por %p95, %p96
      %p98 = scmp.ne.s32.totalorder %s86, %s87
      %p99 = scmp.eq.s32.totalorder %s21, 1
      %p100 = por %p98, %p99
      %p102 = scmp.ne.s32.totalorder %s87, %s101
      %p103 = scmp.eq.s32.totalorder %s21, 0
      %p104 = por %p102, %p103
      %s105 = ssub.s32 %s22, %s34
      %s106 = ssub.s32 %s23, %s30
      %s107 = sor.u32 %s105, %s106
      %p108 = scmp.eq.s32.totalorder %s107, 0
      %s110 = sadd.s32 %s109, 1
      %s111 = scalar_select %p108, %s109, %s110
      %p114 = pneg %p108
      %p115 = scmp.eq.s32.totalorder %s15, 1
      %p116 = por %p114, %p115
      %p117 = scmp.ne.s32.totalorder %s109, %s112
      %p118 = scmp.eq.s32.totalorder %s15, 0
      %p119 = por %p117, %p118
      %p120 = scmp.ne.s32.totalorder %s109, %s112
      %p121 = scmp.eq.s32.totalorder %s20, 1
      %p122 = por %p120, %p121
      %p123 = scmp.ne.s32.totalorder %s112, %s113
      %p124 = scmp.eq.s32.totalorder %s20, 0
      %p125 = por %p123, %p124
      %p126 = scmp.ne.s32.totalorder %s112, %s113
      %p127 = scmp.eq.s32.totalorder %s21, 1
      %p128 = por %p126, %p127
      %p130 = scmp.ne.s32.totalorder %s113, %s129
      %p131 = scmp.eq.s32.totalorder %s21, 0
      %p132 = por %p130, %p131
      %p133 = scmp.le.s32.totalorder 1, %s15
      %p134 = scmp.lt.s32.totalorder %s15, 3
      %p135 = pnand %p133, %p134
      %p136 = pneg %p135
      // Predicated region
      $region9: #{tpu_custom_call.1} parent=5 // pred_check
        _
      $region10: #{tpu_custom_call.1} parent=5 // pred_check_branch
        %138 = sbr.rel (%p135) target = $region12
      $region11: #{tpu_custom_call.1} parent=5 // pred_region
        %s139 = ssub.s32 %s15, 1
        // Predicated region
        $region13: #{tpu_custom_call.1} parent=11 // pred_check
          %p140 = pneg %p76
        $region14: #{tpu_custom_call.1} parent=11 // pred_check_branch
          %142 = sbr.rel (%p140) target = $region16
        $region15: #{tpu_custom_call.1} parent=11 // pred_region
          _
        $region16: #{tpu_custom_call.1} parent=11 // pred_fallthru
          _
        // Predicated region
        $region17: #{tpu_custom_call.1} parent=11 // pred_check
          %p143 = pneg %p97
        $region18: #{tpu_custom_call.1} parent=11 // pred_check_branch
          %145 = sbr.rel (%p143) target = $region20
        $region19: #{tpu_custom_call.1} parent=11 // pred_region
          _
        $region20: #{tpu_custom_call.1} parent=11 // pred_fallthru
          _
      $region12: #{tpu_custom_call.1} parent=5 // pred_fallthru
        _
      %p146 = scmp.lt.s32.totalorder %s15, 2
      // Predicated region
      $region21: #{tpu_custom_call.1} parent=5 // pred_check
        %p147 = pneg %p146
      $region22: #{tpu_custom_call.1} parent=5 // pred_check_branch
        %149 = sbr.rel (%p147) target = $region24
      $region23: #{tpu_custom_call.1} parent=5 // pred_region
        // Predicated region
        $region25: #{tpu_custom_call.1} parent=23 // pred_check
          %p150 = pneg %p49
        $region26: #{tpu_custom_call.1} parent=23 // pred_check_branch
          %152 = sbr.rel (%p150) target = $region28
        $region27: #{tpu_custom_call.1} parent=23 // pred_region
          %s153 = sand.u32 %s39, 1
          %s154 = scalar_lea.sflag [#allocation3], %s153
          %s155 = sand.u32 %s39, 1
          %s156 = smul.addr %s155, 64
          %s157 = scalar_lea.vmem [#allocation2], %s156
          %s158 = smul.u32 4, %s22
          %s160 = ssub.s32 1024, 1024
          %161 = vsyncadd %s154, %s160
          %s162 = smul.addr %s158, 2
          %s163 = sadd.s32 %s23, %s162
          %s164 = smul.addr %s163, 128
          %s165 = scalar_lea.hbm %s0, %s164
          %s166 = sshll.u32 %s157, 4
          %s167 = int_to_ptr.vmem [resolvable:$true] %s166
          %172 = dma.hbm_to_vmem [thread:$0]  %s165, 1024, %s167, %s154, 128, 128, 8
        $region28: #{tpu_custom_call.1} parent=23 // pred_fallthru
          _
      $region24: #{tpu_custom_call.1} parent=5 // pred_fallthru
        _
      %p173 = scmp.le.s32.totalorder 1, %s15
      %p174 = scmp.lt.s32.totalorder %s15, 3
      %p175 = pnand %p173, %p174
      %p176 = pneg %p175
      // Predicated region
      $region29: #{tpu_custom_call.1} parent=5 // pred_check
        _
      $region30: #{tpu_custom_call.1} parent=5 // pred_check_branch
        %178 = sbr.rel (%p175) target = $region32
      $region31: #{tpu_custom_call.1} parent=5 // pred_region
        %s179 = ssub.s32 %s15, 1
        %s180 = sand.u32 %s42, 1
        %s181 = scalar_lea.sflag [#allocation3], %s180
        %s182 = sand.u32 %s42, 1
        %s183 = smul.addr %s182, 64
        %s184 = scalar_lea.vmem [#allocation2], %s183
        // Predicated region
        $region33: #{tpu_custom_call.1} parent=31 // pred_check
          %p185 = pneg %p55
        $region34: #{tpu_custom_call.1} parent=31 // pred_check_branch
          %187 = sbr.rel (%p185) target = $region36
        $region35: #{tpu_custom_call.1} parent=31 // pred_region
          %188 = dma.done %s181, 1024
        $region36: #{tpu_custom_call.1} parent=31 // pred_fallthru
          _
        %s189 = sand.u32 %s42, 1
        %s190 = scalar_lea.sflag [#allocation3], %s189
        %s191 = sand.u32 %s42, 1
        %s192 = smul.addr %s191, 64
        %s193 = scalar_lea.vmem [#allocation2], %s192
        %p194 = pneg %p55
        %p195 = pneg %p52
        %p196 = pneg %p76
        %p197 = pneg %p73
        %p198 = pneg %p97
        %p199 = pneg %p94
        %p200 = pneg %p125
        %p201 = pneg %p122
        %s202 = sand.u32 %s112, 1
        %s203 = scalar_lea.sflag [#allocation4], %s202
        %s204 = sand.u32 %s112, 1
        %s205 = smul.addr %s204, 64
        %s206 = scalar_lea.vmem [#allocation5], %s205
        %s207 = smul.u32 4, %s24
        %s208 = smul.u32 4, %s24
        %v209 = vld [vmem:[%s184] sm:$0xff]
        %v210 = vld [vmem:[%s184 + $0x8] sm:$0xff]
        %v211 = vld [vmem:[%s184 + $0x10] sm:$0xff]
        %v212 = vld [vmem:[%s184 + $0x18] sm:$0xff]
        %v213 = vld [vmem:[%s184 + $0x20] sm:$0xff]
        %v214 = vld [vmem:[%s184 + $0x28] sm:$0xff]
        %v215 = vld [vmem:[%s184 + $0x30] sm:$0xff]
        %v216 = vld [vmem:[%s184 + $0x38] sm:$0xff]
        %vm217 = vcmask 130048
        %v218 = vsel %vm217, %v209, 0.0
        %v219 = vsel %vm217, %v210, 0.0
        %v220 = vadd.f32 %v218, %v219
        %v221 = vrot.slane %v220, 4
        %v222 = vadd.f32 %v220, %v221
        %v223 = vrot.slane %v222, 2
        %v224 = vadd.f32 %v222, %v223
        %v225 = vrot.slane %v224, 1
        %v226 = vadd.f32 %v224, %v225
        %v227 = vsel %vm217, %v211, 0.0
        %v228 = vsel %vm217, %v212, 0.0
        %v229 = vadd.f32 %v227, %v228
        %v230 = vrot.slane %v229, 4
        %v231 = vadd.f32 %v229, %v230
        %v232 = vrot.slane %v231, 2
        %v233 = vadd.f32 %v231, %v232
        %v234 = vrot.slane %v233, 1
        %v235 = vadd.f32 %v233, %v234
        %v236 = vsel %vm217, %v213, 0.0
        %v237 = vsel %vm217, %v214, 0.0
        %v238 = vadd.f32 %v236, %v237
        %v239 = vrot.slane %v238, 4
        %v240 = vadd.f32 %v238, %v239
        %v241 = vrot.slane %v240, 2
        %v242 = vadd.f32 %v240, %v241
        %v243 = vrot.slane %v242, 1
        %v244 = vadd.f32 %v242, %v243
        %v245 = vsel %vm217, %v215, 0.0
        %v246 = vsel %vm217, %v216, 0.0
        %v247 = vadd.f32 %v245, %v246
        %v248 = vrot.slane %v247, 4
        %v249 = vadd.f32 %v247, %v248
        %v250 = vrot.slane %v249, 2
        %v251 = vadd.f32 %v249, %v250
        %v252 = vrot.slane %v251, 1
        %v253 = vadd.f32 %v251, %v252
        %v254 = vmul.f32 %v226, 0.0625
        %v255 = vmul.f32 %v235, 0.0625
        %v256 = vmul.f32 %v244, 0.0625
        %v257 = vmul.f32 %v253, 0.0625
        %v258 = vsub.f32 %v209, %v254
        %v259 = vsub.f32 %v210, %v254
        %v260 = vsub.f32 %v211, %v255
        %v261 = vsub.f32 %v212, %v255
        %v262 = vsub.f32 %v213, %v256
        %v263 = vsub.f32 %v214, %v256
        %v264 = vsub.f32 %v215, %v257
        %v265 = vsub.f32 %v216, %v257
        %v266 = vmul.f32 %v258, %v258
        %v267 = vmul.f32 %v259, %v259
        %v268 = vmul.f32 %v260, %v260
        %v269 = vmul.f32 %v261, %v261
        %v270 = vmul.f32 %v262, %v262
        %v271 = vmul.f32 %v263, %v263
        %v272 = vmul.f32 %v264, %v264
        %v273 = vmul.f32 %v265, %v265
        %v274 = vsel %vm217, %v266, 0.0
        %v275 = vsel %vm217, %v267, 0.0
        %v276 = vadd.f32 %v274, %v275
        %v277 = vrot.slane %v276, 4
        %v278 = vadd.f32 %v276, %v277
        %v279 = vrot.slane %v278, 2
        %v280 = vadd.f32 %v278, %v279
        %v281 = vrot.slane %v280, 1
        %v282 = vadd.f32 %v280, %v281
        %v283 = vsel %vm217, %v268, 0.0
        %v284 = vsel %vm217, %v269, 0.0
        %v285 = vadd.f32 %v283, %v284
        %v286 = vrot.slane %v285, 4
        %v287 = vadd.f32 %v285, %v286
        %v288 = vrot.slane %v287, 2
        %v289 = vadd.f32 %v287, %v288
        %v290 = vrot.slane %v289, 1
        %v291 = vadd.f32 %v289, %v290
        %v292 = vsel %vm217, %v270, 0.0
        %v293 = vsel %vm217, %v271, 0.0
        %v294 = vadd.f32 %v292, %v293
        %v295 = vrot.slane %v294, 4
        %v296 = vadd.f32 %v294, %v295
        %v297 = vrot.slane %v296, 2
        %v298 = vadd.f32 %v296, %v297
        %v299 = vrot.slane %v298, 1
        %v300 = vadd.f32 %v298, %v299
        %v301 = vsel %vm217, %v272, 0.0
        %v302 = vsel %vm217, %v273, 0.0
        %v303 = vadd.f32 %v301, %v302
        %v304 = vrot.slane %v303, 4
        %v305 = vadd.f32 %v303, %v304
        %v306 = vrot.slane %v305, 2
        %v307 = vadd.f32 %v305, %v306
        %v308 = vrot.slane %v307, 1
        %v309 = vadd.f32 %v307, %v308
        %v310 = vmul.f32 %v282, 0.0625
        %v311 = vmul.f32 %v291, 0.0625
        %v312 = vmul.f32 %v300, 0.0625
        %v313 = vmul.f32 %v309, 0.0625
        %v314 = vadd.f32 %v310, 1e-05
        %v315 = vadd.f32 %v311, 1e-05
        %v316 = vadd.f32 %v312, 1e-05
        %v317 = vadd.f32 %v313, 1e-05
        %v318 = vrsqrt.pop %v314
        %v319 = vrsqrt.pop %v315
        %v320 = vrsqrt.pop %v316
        %v321 = vrsqrt.pop %v317
        %v322 = vmul.f32 %v258, %v318
        %v323 = vmul.f32 %v259, %v318
        %v324 = vmul.f32 %v260, %v319
        %v325 = vmul.f32 %v261, %v319
        %v326 = vmul.f32 %v262, %v320
        %v327 = vmul.f32 %v263, %v320
        %v328 = vmul.f32 %v264, %v321
        %v329 = vmul.f32 %v265, %v321
        %v330 = vld [vmem:[%s1] sm:$0xff]
        %v331 = vld [vmem:[%s1 + $0x8] sm:$0xff]
        %333 = vset.pattern.permute.xlu0 0
        %334 = vperm.xlu0 %333, %v330
        %v335 = vpop.permute.xlu0 %334
        %338 = vset.pattern.permute.xlu0 0
        %339 = vperm.xlu0 %338, %v331
        %v340 = vpop.permute.xlu0 %339
        %v342 = vmul.f32 %v322, %v335
        %v343 = vmul.f32 %v323, %v340
        %v344 = vmul.f32 %v324, %v335
        %v345 = vmul.f32 %v325, %v340
        %v346 = vmul.f32 %v326, %v335
        %v347 = vmul.f32 %v327, %v340
        %v348 = vmul.f32 %v328, %v335
        %v349 = vmul.f32 %v329, %v340
        %v350 = vld [vmem:[%s2] sm:$0xff]
        %v351 = vld [vmem:[%s2 + $0x8] sm:$0xff]
        %353 = vset.pattern.permute.xlu0 0
        %354 = vperm.xlu0 %353, %v350
        %v355 = vpop.permute.xlu0 %354
        %358 = vset.pattern.permute.xlu0 0
        %359 = vperm.xlu0 %358, %v351
        %v360 = vpop.permute.xlu0 %359
        %v362 = vadd.f32 %v342, %v355
        %v363 = vadd.f32 %v343, %v360
        %v364 = vadd.f32 %v344, %v355
        %v365 = vadd.f32 %v345, %v360
        %v366 = vadd.f32 %v346, %v355
        %v367 = vadd.f32 %v347, %v360
        %v368 = vadd.f32 %v348, %v355
        %v369 = vadd.f32 %v349, %v360
        %370 = vst.msk [vmem:[%s206] sm:$0xff] %vm217, %v362
        %371 = vst.msk [vmem:[%s206 + $0x8] sm:$0xff] %vm217, %v363
        %372 = vst.msk [vmem:[%s206 + $0x10] sm:$0xff] %vm217, %v364
        %373 = vst.msk [vmem:[%s206 + $0x18] sm:$0xff] %vm217, %v365
        %374 = vst.msk [vmem:[%s206 + $0x20] sm:$0xff] %vm217, %v366
        %375 = vst.msk [vmem:[%s206 + $0x28] sm:$0xff] %vm217, %v367
        %376 = vst.msk [vmem:[%s206 + $0x30] sm:$0xff] %vm217, %v368
        %377 = vst.msk [vmem:[%s206 + $0x38] sm:$0xff] %vm217, %v369
        %s378 = sand.u32 %s112, 1
        %s379 = scalar_lea.sflag [#allocation4], %s378
        %s380 = sand.u32 %s112, 1
        %s381 = smul.addr %s380, 64
        %s382 = scalar_lea.vmem [#allocation5], %s381
        // Predicated region
        $region37: #{tpu_custom_call.1} parent=31 // pred_check
          %p383 = pneg %p122
        $region38: #{tpu_custom_call.1} parent=31 // pred_check_branch
          %385 = sbr.rel (%p383) target = $region40
        $region39: #{tpu_custom_call.1} parent=31 // pred_region
          %s386 = smul.u32 4, %s24
          %s388 = ssub.s32 1024, 1024
          %389 = vsyncadd %s379, %s388
          %s390 = smul.addr %s386, 2
          %s391 = sadd.s32 %s25, %s390
          %s392 = smul.addr %s391, 128
          %s393 = scalar_lea.hbm %s3, %s392
          %s394 = sshll.u32 %s382, 4
          %s395 = int_to_ptr.vmem [resolvable:$true] %s394
          %400 = dma.vmem_to_hbm [thread:$0]  %s395, 1024, %s393, %s379, 128, 128, 8
        $region40: #{tpu_custom_call.1} parent=31 // pred_fallthru
          _
      $region32: #{tpu_custom_call.1} parent=5 // pred_fallthru
        _
      %p401 = scmp.le.s32.totalorder 2, %s15
      // Predicated region
      $region41: #{tpu_custom_call.1} parent=5 // pred_check
        %p402 = pneg %p401
      $region42: #{tpu_custom_call.1} parent=5 // pred_check_branch
        %404 = sbr.rel (%p402) target = $region44
      $region43: #{tpu_custom_call.1} parent=5 // pred_region
        %s405 = ssub.s32 %s15, 2
        // Predicated region
        $region45: #{tpu_custom_call.1} parent=43 // pred_check
          %p406 = pneg %p128
        $region46: #{tpu_custom_call.1} parent=43 // pred_check_branch
          %408 = sbr.rel (%p406) target = $region48
        $region47: #{tpu_custom_call.1} parent=43 // pred_region
          %s409 = sand.u32 %s113, 1
          %s410 = scalar_lea.sflag [#allocation4], %s409
          %s411 = sand.u32 %s113, 1
          %s412 = smul.addr %s411, 64
          %s413 = scalar_lea.vmem [#allocation5], %s412
          %414 = dma.done %s410, 1024
        $region48: #{tpu_custom_call.1} parent=43 // pred_fallthru
          _
      $region44: #{tpu_custom_call.1} parent=5 // pred_fallthru
        _
    $region6: #{tpu_custom_call.1} parent=1 // loop_footer
      %s19 = sadd.s32 1, %s15
    $region7: #{tpu_custom_call.1} parent=1 // loop_footer_branch
      %14 = sbr.rel target = $region3
    $region8: #{tpu_custom_call.1} parent=1 // loop_exit
      _
    %415 = vsyncpa [#allocation3], 1
    %s416 = scalar_lea.sflag [#allocation3], 1
    %417 = vsyncpa %s416, 1
    %418 = vsyncpa [#allocation4], 1
    %s419 = scalar_lea.sflag [#allocation4], 1
    %420 = vsyncpa %s419, 1

</llo_original>
